<compile_context>
chip_gen: v7x
topology: tpu7x:2x2x1
jax: 0.10.0
libtpu: 0.0.40
codegen_flags: <defaults>
</compile_context>

<pallas_src>
import functools

import jax
import jax.numpy as jnp
from jax import lax
from jax.experimental import pallas as pl
from jax.experimental.pallas import tpu as pltpu


def _grad_kernel(x_ref, dy_ref, dx_ref, *, penalty, nc_total, h_total,
                 tb, th, w, rc, n_chunks, use_roll_w):
    """One grid step: partial penalized-difference sums for one (tb, th, W) block.

    x_ref : (tb, th, w) block of the (N*C, H, W) view (input dtype).
    dy_ref: (1, 1, rc, w)   f32 partial sums of the H-direction terms.
    dx_ref: (1, 1, rc, wdx) f32 partial sums of the W-direction terms.
    """
    i = pl.program_id(0)          # block index along fused N*C
    j = pl.program_id(1)          # block index along H

    def penal(d):
        d = d.astype(jnp.float32)
        return d * d if penalty == "l2" else jnp.abs(d)

    # Loop-invariant index vectors, hoisted (JAX does not CSE broadcast_in_dim).
    row_iota = lax.broadcasted_iota(jnp.int32, (rc, 1), 0)
    lane_ok = None
    if use_roll_w:
        lane_ok = lax.broadcasted_iota(jnp.int32, (1, w), 1) < (w - 1)

    # Ragged N*C tail: just bound the slice loop (no HBM padding, no masks).
    valid_n = jnp.minimum(tb, nc_total - i * tb)
    carry0 = jnp.zeros((1, w), x_ref.dtype)

    def slice_body(n, accs):
        acc_dy, acc_dx = accs

        def chunk_body(c, state):
            a_dy, a_dx, prev_row = state
            # Row-chunk start.  The last chunk of a block whose row count is
            # not a multiple of rc is clamped back inside the block; the
            # `fresh` mask drops rows the previous chunk already accumulated.
            if th % rc == 0:
                r0 = pl.multiple_of(c * rc, rc)
            else:
                r0 = jnp.minimum(c * rc, th - rc)
            xc = x_ref[n, pl.ds(r0, rc), :]                       # (rc, w)

            local_row = r0 + row_iota                             # row inside block
            global_row = j * th + local_row                       # row inside image
            fresh = local_row >= c * rc                           # not yet counted
            row_ok = fresh & (global_row < h_total)               # ragged H tail

            # ---- W-direction: x[h, p] - x[h, p + 1] -------------------------
            if use_roll_w:
                nxt = pltpu.roll(xc, shift=w - 1, axis=1)         # == roll by -1 (XLU)
                a_dx = a_dx + jnp.where(row_ok & lane_ok, penal(xc - nxt), 0.0)
            else:
                # W not a multiple of 128: aligned-start chunk slices instead.
                a_dx = a_dx + jnp.where(row_ok, penal(xc[:, :-1] - xc[:, 1:]), 0.0)

            # ---- H-direction: x[h - 1, p] - x[h, p] -------------------------
            # prev[k] = row (local_row[k] - 1); the chunk's first row comes from
            # the carried last row of the previous chunk.
            if rc == 8:
                prev = pltpu.roll(xc, shift=1, axis=0)            # sublane rotate
                prev = jnp.where(row_iota == 0, prev_row, prev)
            elif rc > 1:
                prev = jnp.concatenate([prev_row, xc[:-1, :]], axis=0)
            else:
                prev = prev_row
            # local_row == 0 is the cross-block pair: added back by the JAX
            # fixup in the wrapper (and nonexistent when j == 0).
            dy_ok = row_ok & (local_row > 0)
            a_dy = a_dy + jnp.where(dy_ok, penal(prev - xc), 0.0)

            return a_dy, a_dx, xc[rc - 1:rc, :]

        acc_dy, acc_dx, _ = lax.fori_loop(
            0, n_chunks, chunk_body, (acc_dy, acc_dx, carry0),
            unroll=bool(n_chunks <= 8))
        return acc_dy, acc_dx

    wdx = w if use_roll_w else w - 1
    acc_dy, acc_dx = lax.fori_loop(
        0, valid_n, slice_body,
        (jnp.zeros((rc, w), jnp.float32), jnp.zeros((rc, wdx), jnp.float32)))

    dy_ref[0, 0, :, :] = acc_dy
    dx_ref[0, 0, :, :] = acc_dx


def gradient_loss(flow, penalty="l2", *, block_nc=None, block_h=None):
    """Pallas TPU implementation of models/loss/grad.py::Gradient (2-D case).

    flow: (N, C, H, W).  Assumes H >= 2 and W >= 2 (the loss is degenerate
    otherwise).  Returns the loss in float32 (the reduction dtype).
    """
    if penalty not in ("l1", "l2"):
        raise ValueError(f"penalty must be 'l1' or 'l2', got {penalty!r}")
    if flow.ndim != 4:
        raise NotImplementedError("only 4-D (N, C, H, W) flows are supported")
    N, C, H, W = flow.shape
    NC = N * C
    # Free view: merging the leading dims keeps the (H, W) minor layout.
    x3 = flow.reshape(NC, H, W)

    itemsize = flow.dtype.itemsize
    slice_bytes = H * W * itemsize
    total_bytes = NC * slice_bytes

    # Block budget: big enough to amortize the ~0.35 us/step pipeline overhead,
    # small enough that 2x double-buffered inputs stay far below the scoped
    # VMEM limit on every generation (v7x: 64 MiB physical), and small enough
    # that large tensors still produce >= ~8 grid steps (overlap + megacore).
    _MIN_BLOCK = 512 * 1024
    _MAX_BLOCK = 4 * 1024 * 1024
    budget = int(min(_MAX_BLOCK, max(_MIN_BLOCK, total_bytes // 8)))

    if block_h is not None:
        th = min(int(block_h), H)
    elif slice_bytes <= budget:
        th = H                                  # whole (H, W) slices per block
    else:
        th = max(8, ((budget // (W * itemsize)) // 8) * 8)
        th = min(th, H)
    if th != H and th % 8 != 0:
        raise ValueError("block_h must be a multiple of 8 (or cover all of H)")

    row_bytes = th * W * itemsize
    if block_nc is not None:
        tb = max(1, min(NC, int(block_nc)))
    else:
        tb = max(1, min(NC, budget // max(row_bytes, 1)))

    gn = pl.cdiv(NC, tb)
    gh = pl.cdiv(H, th)
    rc = min(8, th)                     # rows per vreg chunk
    n_chunks = pl.cdiv(th, rc)
    use_roll_w = (W % 128 == 0)
    wdx = W if use_roll_w else W - 1

    kernel = functools.partial(
        _grad_kernel, penalty=penalty, nc_total=NC, h_total=H,
        tb=tb, th=th, w=W, rc=rc, n_chunks=n_chunks, use_roll_w=use_roll_w)

    dy_part, dx_part = pl.pallas_call(
        kernel,
        out_shape=(
            jax.ShapeDtypeStruct((gn, gh, rc, W), jnp.float32),
            jax.ShapeDtypeStruct((gn, gh, rc, wdx), jnp.float32),
        ),
        grid_spec=pltpu.PrefetchScalarGridSpec(
            num_scalar_prefetch=0,
            grid=(gn, gh),
            in_specs=[pl.BlockSpec((tb, th, W), lambda i, j: (i, j, 0))],
            out_specs=[
                pl.BlockSpec((1, 1, rc, W), lambda i, j: (i, j, 0, 0)),
                pl.BlockSpec((1, 1, rc, wdx), lambda i, j: (i, j, 0, 0)),
            ],
        ),
        compiler_params=pltpu.CompilerParams(
            # Each step writes its own partial-sum tile -> both axes parallel.
            dimension_semantics=("parallel", "parallel"),
            vmem_limit_bytes=32 * 1024 * 1024,
        ),
    )(x3)

    dy_total = jnp.sum(dy_part)
    dx_total = jnp.sum(dx_part)

    # dy pairs that cross an H-tile boundary (rows th-1/th, 2th-1/2th, ...):
    # a tiny strided gather in plain JAX instead of halo blocks in the kernel.
    if gh > 1:
        a = x3[:, th - 1:(gh - 1) * th:th, :]
        b = x3[:, th:(gh - 1) * th + 1:th, :]
        d = (a - b).astype(jnp.float32)
        d = d * d if penalty == "l2" else jnp.abs(d)
        dy_total = dy_total + jnp.sum(d)

    mean_dy = dy_total / (NC * (H - 1) * W)      # ddim along H: (N, C, H-1, W)
    mean_dx = dx_total / (NC * H * (W - 1))      # ddim along W: (N, C, H, W-1)
    # f32 reduction dtype (the PyTorch module would return the input dtype).
    return (mean_dy + mean_dx) * 0.5


def gradient_loss_ref(flow, penalty="l2"):
    """Pure-JAX reference matching the PyTorch forward."""
    nabla = []
    for dim in range(2, flow.ndim):
        n = flow.shape[dim]
        a = lax.slice_in_dim(flow, 0, n - 1, axis=dim)
        b = lax.slice_in_dim(flow, 1, n, axis=dim)
        d = (a - b).astype(jnp.float32)
        d = d * d if penalty == "l2" else jnp.abs(d)
        nabla.append(jnp.mean(d))
    return jnp.mean(jnp.stack(nabla))


if __name__ == "__main__":
    key = jax.random.PRNGKey(0)
    k1, k2, k3, k4 = jax.random.split(key, 4)

    # Shape implied by the module: batch=2, channels=4, 16x16 flow field.
    flow = jax.random.normal(k1, (2, 4, 16, 16), dtype=jnp.float32)
    for penalty in ("l2", "l1"):
        out = jax.block_until_ready(gradient_loss(flow, penalty=penalty))
        ref = gradient_loss_ref(flow, penalty=penalty)
        assert jnp.allclose(out, ref, rtol=1e-5, atol=1e-6), (penalty, out, ref)

    # Ragged N*C tail + H tiling + cross-block dy fixup.
    flow2 = jax.random.normal(k2, (3, 2, 44, 136), dtype=jnp.float32)
    out = jax.block_until_ready(gradient_loss(flow2, "l2", block_nc=4, block_h=16))
    ref = gradient_loss_ref(flow2, "l2")
    assert jnp.allclose(out, ref, rtol=1e-5, atol=1e-6), ("ragged", out, ref)

    # H not a multiple of 8 with a single H block (clamped last row chunk).
    flow3 = jax.random.normal(k3, (2, 3, 20, 16), dtype=jnp.float32)
    out = jax.block_until_ready(gradient_loss(flow3, "l1"))
    ref = gradient_loss_ref(flow3, "l1")
    assert jnp.allclose(out, ref, rtol=1e-5, atol=1e-6), ("clamped", out, ref)

    # bf16 input, lane-aligned W (roll path in both directions) + H tiling.
    flow4 = jax.random.normal(k4, (2, 2, 24, 128), dtype=jnp.bfloat16)
    out = jax.block_until_ready(gradient_loss(flow4, "l2", block_h=8))
    ref = gradient_loss_ref(flow4, "l2")
    assert jnp.allclose(out, ref, rtol=1e-3, atol=1e-5), ("bf16", out, ref)

    print("KERNEL_OK")
</pallas_src>

<mosaic_0001>
module attributes {stable_mosaic.version = 11 : i64} {
  func.func @_grad_kernel(%arg0: i32, %arg1: i32, %arg2: memref<8x16x16xf32, #tpu.memory_space<vmem>>, %arg3: memref<1x1x8x16xf32, #tpu.memory_space<vmem>>, %arg4: memref<1x1x8x15xf32, #tpu.memory_space<vmem>>) attributes {dimension_semantics = [#tpu.dimension_semantics<parallel>, #tpu.dimension_semantics<parallel>], iteration_bounds = array<i64: 1, 1>, scalar_prefetch = 0 : i64, scratch_operands = 0 : i64, tpu.core_type = #tpu.core_type<tc>, window_params = [{transform_indices = @transform_0, window_bounds = array<i64: 8, 16, 16>}, {transform_indices = @transform_1, window_bounds = array<i64: 1, 1, 8, 16>}, {transform_indices = @transform_2, window_bounds = array<i64: 1, 1, 8, 15>}]} {
    %0 = tpu.iota {dimensions = array<i32: 0>} : vector<8x1xi32>
    %c8_i32 = arith.constant 8 : i32
    %1 = arith.muli %arg0, %c8_i32 : i32
    %c8_i32_0 = arith.constant 8 : i32
    %2 = arith.subi %c8_i32_0, %1 : i32
    %c8_i32_1 = arith.constant 8 : i32
    %3 = arith.minsi %c8_i32_1, %2 : i32
    %cst = arith.constant 0.000000e+00 : f32
    %4 = vector.broadcast %cst : f32 to vector<1x16xf32>
    %cst_2 = arith.constant 0.000000e+00 : f32
    %5 = vector.broadcast %cst_2 : f32 to vector<8x16xf32>
    %cst_3 = arith.constant 0.000000e+00 : f32
    %6 = vector.broadcast %cst_3 : f32 to vector<8x15xf32>
    %c0_i32 = arith.constant 0 : i32
    %7 = arith.subi %3, %c0_i32 : i32
    %8 = arith.addi %c0_i32, %7 : i32
    %c1_i32 = arith.constant 1 : i32
    %9:2 = scf.for %arg5 = %c0_i32 to %8 step %c1_i32 iter_args(%arg6 = %5, %arg7 = %6) -> (vector<8x16xf32>, vector<8x15xf32>)  : i32 {
      %c0_i32_11 = arith.constant 0 : i32
      %c8_i32_12 = arith.constant 8 : i32
      %16 = arith.muli %c0_i32_11, %c8_i32_12 : i32
      %17 = tpu.assume_multiple %16, 8 : i32
      %18 = arith.index_cast %arg5 : i32 to index
      %19 = arith.index_cast %17 : i32 to index
      %c0_13 = arith.constant 0 : index
      %20 = vector.load %arg2[%18, %19, %c0_13] : memref<8x16x16xf32, #tpu.memory_space<vmem>>, vector<1x8x16xf32>
      %21 = vector.shape_cast %20 : vector<1x8x16xf32> to vector<8x16xf32>
      %22 = vector.broadcast %17 : i32 to vector<8x1xi32>
      %23 = arith.addi %22, %0 : vector<8x1xi32>
      %c16_i32 = arith.constant 16 : i32
      %24 = arith.muli %arg1, %c16_i32 : i32
      %25 = vector.broadcast %24 : i32 to vector<8x1xi32>
      %26 = arith.addi %25, %23 : vector<8x1xi32>
      %c8_i32_14 = arith.constant 8 : i32
      %27 = arith.muli %c0_i32_11, %c8_i32_14 : i32
      %28 = vector.broadcast %27 : i32 to vector<8x1xi32>
      %29 = arith.cmpi sge, %23, %28 : vector<8x1xi32>
      %c16_i32_15 = arith.constant 16 : i32
      %30 = vector.broadcast %c16_i32_15 : i32 to vector<8x1xi32>
      %31 = arith.cmpi slt, %26, %30 : vector<8x1xi32>
      %32 = arith.andi %29, %31 : vector<8x1xi1>
      %33 = vector.extract_strided_slice %21 {offsets = [0, 0], sizes = [8, 15], strides = [1, 1]} : vector<8x16xf32> to vector<8x15xf32>
      %34 = vector.extract_strided_slice %21 {offsets = [0, 1], sizes = [8, 15], strides = [1, 1]} : vector<8x16xf32> to vector<8x15xf32>
      %35 = arith.subf %33, %34 : vector<8x15xf32>
      %36 = arith.mulf %35, %35 : vector<8x15xf32>
      %cst_16 = arith.constant 0.000000e+00 : f32
      %37 = vector.shape_cast %32 : vector<8x1xi1> to vector<8x1xi1>
      %38 = vector.broadcast %37 : vector<8x1xi1> to vector<8x15xi1>
      %39 = vector.broadcast %cst_16 : f32 to vector<8x15xf32>
      %40 = arith.select %38, %36, %39 : vector<8x15xi1>, vector<8x15xf32>
      %41 = arith.addf %arg7, %40 : vector<8x15xf32>
      %c1_i32_17 = arith.constant 1 : i32
      %42 = tpu.dynamic_rotate %21 by %c1_i32_17 dim 0 : vector<8x16xf32>, i32 -> vector<8x16xf32>
      %c0_i32_18 = arith.constant 0 : i32
      %43 = vector.broadcast %c0_i32_18 : i32 to vector<8x1xi32>
      %44 = arith.cmpi eq, %0, %43 : vector<8x1xi32>
      %45 = vector.shape_cast %44 : vector<8x1xi1> to vector<8x1xi1>
      %46 = vector.broadcast %45 : vector<8x1xi1> to vector<8x16xi1>
      %47 = vector.shape_cast %4 : vector<1x16xf32> to vector<1x16xf32>
      %48 = vector.broadcast %47 : vector<1x16xf32> to vector<8x16xf32>
      %49 = arith.select %46, %48, %42 : vector<8x16xi1>, vector<8x16xf32>
      %c0_i32_19 = arith.constant 0 : i32
      %50 = vector.broadcast %c0_i32_19 : i32 to vector<8x1xi32>
      %51 = arith.cmpi sgt, %23, %50 : vector<8x1xi32>
      %52 = arith.andi %32, %51 : vector<8x1xi1>
      %53 = arith.subf %49, %21 : vector<8x16xf32>
      %54 = arith.mulf %53, %53 : vector<8x16xf32>
      %cst_20 = arith.constant 0.000000e+00 : f32
      %55 = vector.shape_cast %52 : vector<8x1xi1> to vector<8x1xi1>
      %56 = vector.broadcast %55 : vector<8x1xi1> to vector<8x16xi1>
      %57 = vector.broadcast %cst_20 : f32 to vector<8x16xf32>
      %58 = arith.select %56, %54, %57 : vector<8x16xi1>, vector<8x16xf32>
      %59 = arith.addf %arg6, %58 : vector<8x16xf32>
      %60 = vector.extract_strided_slice %21 {offsets = [7, 0], sizes = [1, 16], strides = [1, 1]} : vector<8x16xf32> to vector<1x16xf32>
      %c1_i32_21 = arith.constant 1 : i32
      %c8_i32_22 = arith.constant 8 : i32
      %61 = arith.muli %c1_i32_21, %c8_i32_22 : i32
      %62 = tpu.assume_multiple %61, 8 : i32
      %63 = arith.index_cast %arg5 : i32 to index
      %64 = arith.index_cast %62 : i32 to index
      %c0_23 = arith.constant 0 : index
      %65 = vector.load %arg2[%63, %64, %c0_23] : memref<8x16x16xf32, #tpu.memory_space<vmem>>, vector<1x8x16xf32>
      %66 = vector.shape_cast %65 : vector<1x8x16xf32> to vector<8x16xf32>
      %67 = vector.broadcast %62 : i32 to vector<8x1xi32>
      %68 = arith.addi %67, %0 : vector<8x1xi32>
      %c16_i32_24 = arith.constant 16 : i32
      %69 = arith.muli %arg1, %c16_i32_24 : i32
      %70 = vector.broadcast %69 : i32 to vector<8x1xi32>
      %71 = arith.addi %70, %68 : vector<8x1xi32>
      %c8_i32_25 = arith.constant 8 : i32
      %72 = arith.muli %c1_i32_21, %c8_i32_25 : i32
      %73 = vector.broadcast %72 : i32 to vector<8x1xi32>
      %74 = arith.cmpi sge, %68, %73 : vector<8x1xi32>
      %c16_i32_26 = arith.constant 16 : i32
      %75 = vector.broadcast %c16_i32_26 : i32 to vector<8x1xi32>
      %76 = arith.cmpi slt, %71, %75 : vector<8x1xi32>
      %77 = arith.andi %74, %76 : vector<8x1xi1>
      %78 = vector.extract_strided_slice %66 {offsets = [0, 0], sizes = [8, 15], strides = [1, 1]} : vector<8x16xf32> to vector<8x15xf32>
      %79 = vector.extract_strided_slice %66 {offsets = [0, 1], sizes = [8, 15], strides = [1, 1]} : vector<8x16xf32> to vector<8x15xf32>
      %80 = arith.subf %78, %79 : vector<8x15xf32>
      %81 = arith.mulf %80, %80 : vector<8x15xf32>
      %cst_27 = arith.constant 0.000000e+00 : f32
      %82 = vector.shape_cast %77 : vector<8x1xi1> to vector<8x1xi1>
      %83 = vector.broadcast %82 : vector<8x1xi1> to vector<8x15xi1>
      %84 = vector.broadcast %cst_27 : f32 to vector<8x15xf32>
      %85 = arith.select %83, %81, %84 : vector<8x15xi1>, vector<8x15xf32>
      %86 = arith.addf %41, %85 : vector<8x15xf32>
      %c1_i32_28 = arith.constant 1 : i32
      %87 = tpu.dynamic_rotate %66 by %c1_i32_28 dim 0 : vector<8x16xf32>, i32 -> vector<8x16xf32>
      %c0_i32_29 = arith.constant 0 : i32
      %88 = vector.broadcast %c0_i32_29 : i32 to vector<8x1xi32>
      %89 = arith.cmpi eq, %0, %88 : vector<8x1xi32>
      %90 = vector.shape_cast %89 : vector<8x1xi1> to vector<8x1xi1>
      %91 = vector.broadcast %90 : vector<8x1xi1> to vector<8x16xi1>
      %92 = vector.shape_cast %60 : vector<1x16xf32> to vector<1x16xf32>
      %93 = vector.broadcast %92 : vector<1x16xf32> to vector<8x16xf32>
      %94 = arith.select %91, %93, %87 : vector<8x16xi1>, vector<8x16xf32>
      %c0_i32_30 = arith.constant 0 : i32
      %95 = vector.broadcast %c0_i32_30 : i32 to vector<8x1xi32>
      %96 = arith.cmpi sgt, %68, %95 : vector<8x1xi32>
      %97 = arith.andi %77, %96 : vector<8x1xi1>
      %98 = arith.subf %94, %66 : vector<8x16xf32>
      %99 = arith.mulf %98, %98 : vector<8x16xf32>
      %cst_31 = arith.constant 0.000000e+00 : f32
      %100 = vector.shape_cast %97 : vector<8x1xi1> to vector<8x1xi1>
      %101 = vector.broadcast %100 : vector<8x1xi1> to vector<8x16xi1>
      %102 = vector.broadcast %cst_31 : f32 to vector<8x16xf32>
      %103 = arith.select %101, %99, %102 : vector<8x16xi1>, vector<8x16xf32>
      %104 = arith.addf %59, %103 : vector<8x16xf32>
      %105 = vector.extract_strided_slice %66 {offsets = [7, 0], sizes = [1, 16], strides = [1, 1]} : vector<8x16xf32> to vector<1x16xf32>
      %c2_i32 = arith.constant 2 : i32
      scf.yield %104, %86 : vector<8x16xf32>, vector<8x15xf32>
    }
    %c0 = arith.constant 0 : index
    %c0_4 = arith.constant 0 : index
    %c0_5 = arith.constant 0 : index
    %c0_6 = arith.constant 0 : index
    %10 = vector.load %arg3[%c0, %c0_4, %c0_5, %c0_6] : memref<1x1x8x16xf32, #tpu.memory_space<vmem>>, vector<1x1x8x16xf32>
    %11 = vector.shape_cast %10 : vector<1x1x8x16xf32> to vector<8x16xf32>
    %12 = vector.shape_cast %9#0 : vector<8x16xf32> to vector<1x1x8x16xf32>
    tpu.vector_store %arg3[%c0, %c0_4, %c0_5, %c0_6], %12 {strides = array<i32>} : memref<1x1x8x16xf32, #tpu.memory_space<vmem>>, vector<1x1x8x16xf32>,
    %c0_7 = arith.constant 0 : index
    %c0_8 = arith.constant 0 : index
    %c0_9 = arith.constant 0 : index
    %c0_10 = arith.constant 0 : index
    %13 = vector.load %arg4[%c0_7, %c0_8, %c0_9, %c0_10] : memref<1x1x8x15xf32, #tpu.memory_space<vmem>>, vector<1x1x8x15xf32>
    %14 = vector.shape_cast %13 : vector<1x1x8x15xf32> to vector<8x15xf32>
    %15 = vector.shape_cast %9#1 : vector<8x15xf32> to vector<1x1x8x15xf32>
    tpu.vector_store %arg4[%c0_7, %c0_8, %c0_9, %c0_10], %15 {strides = array<i32>} : memref<1x1x8x15xf32, #tpu.memory_space<vmem>>, vector<1x1x8x15xf32>,
    return
  }
  func.func @transform_0(%arg0: i32, %arg1: i32) -> (i32, i32, i32) {
    %c0_i32 = arith.constant 0 : i32
    %c0_i32_0 = arith.constant 0 : i32
    return %arg0, %arg1, %c0_i32 : i32, i32, i32
  }
  func.func @transform_1(%arg0: i32, %arg1: i32) -> (i32, i32, i32, i32) {
    %c0_i32 = arith.constant 0 : i32
    %c0_i32_0 = arith.constant 0 : i32
    %c0_i32_1 = arith.constant 0 : i32
    return %arg0, %arg1, %c0_i32, %c0_i32_0 : i32, i32, i32, i32
  }
  func.func @transform_2(%arg0: i32, %arg1: i32) -> (i32, i32, i32, i32) {
    %c0_i32 = arith.constant 0 : i32
    %c0_i32_0 = arith.constant 0 : i32
    %c0_i32_1 = arith.constant 0 : i32
    return %arg0, %arg1, %c0_i32, %c0_i32_0 : i32, i32, i32, i32
  }
}

</mosaic_0001>

<llo_original>
// kernel: tpu_custom_call.1
$region0: #{tpu_custom_call.1}
  #allocation0 [shape = 'u32[]', space=smem, size = 0x4, offset = 0x4, fixed_abs, tag = 'smem constant byte address 0x4 - core index']
  #allocation1 [shape = 'u32[144,128]{1,0:T(1,128)}', space=vmem, size = 0x12000, scoped, tag = 'internal scratch']
  %s0 = inlined_call_operand.hbm [shape: f32[8,16,16], index: 0, kind: input, shape index: {}]
  %s1 = inlined_call_operand.hbm [shape: f32[1,1,8,16], index: 1, kind: output, shape index: {0}]
  %s2 = inlined_call_operand.hbm [shape: f32[1,1,8,15], index: 2, kind: output, shape index: {1}]
  %3 = xla_tuple %s1, %s2
  %s4 = sld [smem:[#allocation0]]
  $region33: #{tpu_custom_call.1} parent=0
    _
  %s6 = ssub.s32 1, %s4
  %s7 = scalar_select 0, %s6, %s4
  $region1: #{tpu_custom_call.1} parent=0
    #allocation2 [shape = 'u8[65536]{0}', space=vmem, size = 0x10000, scoped, tag = 'input window, operand 0, single buffered']
    #allocation3 [shape = 's32[1]{0}', space=sflag, size = 0x4, scoped, tag = 'scoped memory for tpu_custom_call.1']
    #allocation4 [shape = 's32[1]{0}', space=sflag, size = 0x4, scoped, tag = 'scoped memory for tpu_custom_call.1']
    #allocation5 [shape = 'u8[4096]{0}', space=vmem, size = 0x1000, scoped, tag = 'output window, operand 0, single buffered']
    #allocation6 [shape = 'u8[4096]{0}', space=vmem, size = 0x1000, scoped, tag = 'output window, operand 1, single buffered']
    #allocation7 [shape = 's32[1]{0}', space=sflag, size = 0x4, scoped, tag = 'scoped memory for tpu_custom_call.1']
    %8 = vsyncpa [#allocation3], 0
    %9 = vsyncpa [#allocation4], 0
    %10 = vsyncpa [#allocation7], 0
    // Predicated region
    $region2: #{tpu_custom_call.1} parent=1 // pred_check
      _
    $region3: #{tpu_custom_call.1} parent=1 // pred_check_branch
      %12 = sbr.rel (0) target = $region5
    $region4: #{tpu_custom_call.1} parent=1 // pred_region
      %s14 = ssub.s32 2048, 2048
      %15 = vsyncadd [#allocation3], %s14
      %s16 = sshll.u32 [#allocation2], 4
      %s17 = int_to_ptr.vmem [resolvable:$true] %s16
      %22 = dma.hbm_to_vmem [thread:$0]  %s0, 2048, %s17, [#allocation3], 128, 128, 8
    $region5: #{tpu_custom_call.1} parent=1 // pred_fallthru
      _
    // Predicated region
    $region6: #{tpu_custom_call.1} parent=1 // pred_check
      _
    $region7: #{tpu_custom_call.1} parent=1 // pred_check_branch
      %24 = sbr.rel (0) target = $region9
    $region8: #{tpu_custom_call.1} parent=1 // pred_region
      %25 = dma.done [#allocation3], 2048
    $region9: #{tpu_custom_call.1} parent=1 // pred_fallthru
      _
    %v26 = vlaneseq
    %v27 = vshrl.u32 %v26, 7
    %s28 = smul.u32 0, 8
    %s29 = ssub.s32 8, %s28
    %p30 = scmp.lt.s32.totalorder %s29, 8
    %s31 = scalar_select %p30, %s29, 8
    // While loop
    $region10: #{tpu_custom_call.1} parent=1 // loop_pre_header
      _
    $region11: #{tpu_custom_call.1} parent=1 // loop_header
      %s33 = sphi 0, %s35
      %p34 = scmp.ge.s32.totalorder %s33, %s31
      %v38 = vphi 0.0, %v107
      %v39 = vphi 0.0, %v93
    $region12: #{tpu_custom_call.1} parent=1 // loop_header_branch
      %37 = sbr.rel (%p34) target = $region16
    $region13: #{tpu_custom_call.1} parent=1 // loop_body
      %s40 = smul.u32 %s33, 16
      %s41 = sadd.s32 0, %s40
      %s42 = scalar_lea.vmem [#allocation2], %s41
      %v43 = vld [vmem:[%s42] sm:$0xff]
      %v44 = vstv 0
      %v45 = vadd.s32 %v44, %v27
      %s46 = smul.u32 0, 16
      %v47 = vstv %s46
      %v48 = vadd.s32 %v47, %v45
      %vm49 = vcmp.ge.s32.totalorder %v45, 0
      %vm50 = vcmp.lt.s32.totalorder %v48, 16
      %vm51 = vmand %vm49, %vm50
      %53 = vrot.lane.b32.xlu0 %v43, 127
      %v54 = vpop.permute.xlu0 %53
      %v56 = vsub.f32 %v43, %v54
      %v57 = vmul.f32 %v56, %v56
      %v58 = vsel %vm51, 1, 0
      %vm59 = vcmp.eq.s32.totalorder %v58, 1
      %v60 = vsel %vm59, %v57, 0.0
      %v61 = vadd.f32 %v39, %v60
      %v62 = vrot.slane %v43, 7
      %vm63 = vcmp.eq.s32.totalorder %v27, 0
      %v64 = vsel %vm63, 1, 0
      %vm65 = vcmp.eq.s32.totalorder %v64, 1
      %v66 = vsel %vm65, 0.0, %v62
      %vm67 = vcmp.gt.s32.totalorder %v45, 0
      %vm68 = vmand %vm51, %vm67
      %v69 = vsub.f32 %v66, %v43
      %v70 = vmul.f32 %v69, %v69
      %v71 = vsel %vm68, 1, 0
      %vm72 = vcmp.eq.s32.totalorder %v71, 1
      %v73 = vsel %vm72, %v70, 0.0
      %v74 = vadd.f32 %v38, %v73
      %s75 = sadd.s32 8, %s40
      %s76 = scalar_lea.vmem [#allocation2], %s75
      %v77 = vld [vmem:[%s76] sm:$0xff]
      %v78 = vstv 8
      %v79 = vadd.s32 %v78, %v27
      %v80 = vadd.s32 %v47, %v79
      %vm81 = vcmp.ge.s32.totalorder %v79, 8
      %vm82 = vcmp.lt.s32.totalorder %v80, 16
      %vm83 = vmand %vm81, %vm82
      %85 = vrot.lane.b32.xlu0 %v77, 127
      %v86 = vpop.permute.xlu0 %85
      %v88 = vsub.f32 %v77, %v86
      %v89 = vmul.f32 %v88, %v88
      %v90 = vsel %vm83, 1, 0
      %vm91 = vcmp.eq.s32.totalorder %v90, 1
      %v92 = vsel %vm91, %v89, 0.0
      %v93 = vadd.f32 %v61, %v92
      %v94 = vrot.slane %v77, 7
      %v95 = vlaneseq
      %v96 = vshrl.u32 %v95, 7
      %v97 = vsub.s32 7, %v96
      %v98 = vrot.slane %v43, %v97
      %v99 = vsel %vm65, %v98, %v94
      %vm100 = vcmp.gt.s32.totalorder %v79, 0
      %vm101 = vmand %vm83, %vm100
      %v102 = vsub.f32 %v99, %v77
      %v103 = vmul.f32 %v102, %v102
      %v104 = vsel %vm101, 1, 0
      %vm105 = vcmp.eq.s32.totalorder %v104, 1
      %v106 = vsel %vm105, %v103, 0.0
      %v107 = vadd.f32 %v74, %v106
    $region14: #{tpu_custom_call.1} parent=1 // loop_footer
      %s35 = sadd.s32 %s33, 1
    $region15: #{tpu_custom_call.1} parent=1 // loop_footer_branch
      %32 = sbr.rel target = $region11
    $region16: #{tpu_custom_call.1} parent=1 // loop_exit
      _
    %vm108 = vcmask 130048
    %109 = vst.msk [vmem:[#allocation5] sm:$0xff] %vm108, %v38
    %vm110 = vcmask 121856
    %111 = vst.msk [vmem:[#allocation6] sm:$0xff] %vm110, %v39
    // Predicated region
    $region17: #{tpu_custom_call.1} parent=1 // pred_check
      _
    $region18: #{tpu_custom_call.1} parent=1 // pred_check_branch
      %113 = sbr.rel (0) target = $region20
    $region19: #{tpu_custom_call.1} parent=1 // pred_region
      %s115 = ssub.s32 128, 128
      %116 = vsyncadd [#allocation4], %s115
      %s118 = sshll.u32 [#allocation5], 4
      %s119 = int_to_ptr.vmem [resolvable:$true] %s118
      %121 = dma.vmem_to_hbm [thread:$0]  %s119, 128, %s1, [#allocation4]
    $region20: #{tpu_custom_call.1} parent=1 // pred_fallthru
      _
    // Predicated region
    $region21: #{tpu_custom_call.1} parent=1 // pred_check
      _
    $region22: #{tpu_custom_call.1} parent=1 // pred_check_branch
      %123 = sbr.rel (0) target = $region24
    $region23: #{tpu_custom_call.1} parent=1 // pred_region
      %s125 = ssub.s32 128, 128
      %126 = vsyncadd [#allocation7], %s125
      %s128 = sshll.u32 [#allocation6], 4
      %s129 = int_to_ptr.vmem [resolvable:$true] %s128
      %131 = dma.vmem_to_hbm [thread:$0]  %s129, 128, %s2, [#allocation7]
    $region24: #{tpu_custom_call.1} parent=1 // pred_fallthru
      _
    // Predicated region
    $region25: #{tpu_custom_call.1} parent=1 // pred_check
      _
    $region26: #{tpu_custom_call.1} parent=1 // pred_check_branch
      %133 = sbr.rel (0) target = $region28
    $region27: #{tpu_custom_call.1} parent=1 // pred_region
      %134 = dma.done [#allocation4], 128
    $region28: #{tpu_custom_call.1} parent=1 // pred_fallthru
      _
    // Predicated region
    $region29: #{tpu_custom_call.1} parent=1 // pred_check
      _
    $region30: #{tpu_custom_call.1} parent=1 // pred_check_branch
      %136 = sbr.rel (0) target = $region32
    $region31: #{tpu_custom_call.1} parent=1 // pred_region
      %137 = dma.done [#allocation7], 128
    $region32: #{tpu_custom_call.1} parent=1 // pred_fallthru
      _
    %138 = vsyncpa [#allocation3], 1
    %139 = vsyncpa [#allocation4], 1
    %140 = vsyncpa [#allocation7], 1

</llo_original>
